<compile_context>
chip_gen: v7x
topology: tpu7x:2x2x1
jax: 0.10.0
libtpu: 0.0.40
codegen_flags: <defaults>
</compile_context>

<pallas_src>
import functools
import math

import jax
import jax.numpy as jnp
from jax import lax
from jax.experimental import pallas as pl
from jax.experimental.pallas import tpu as pltpu


def _glove_loss_kernel(log_x_max, n_total,
                       fidx_ref, cidx_ref, cc_ref, ftab_ref, ctab_ref,
                       out_ref, acc_ref):
    """One micro-batch per grid step; five global sums accumulated in acc_ref."""
    step = pl.program_id(0)
    rows, vocab = ftab_ref.shape          # rows = E_pad + 1 (bias row last)
    mb = fidx_ref.shape[1]
    e_pad = rows - 1

    @pl.when(step == 0)
    def _():
        acc_ref[...] = jnp.zeros_like(acc_ref)

    fidx = fidx_ref[...]                                   # (1, MB) int32
    cidx = cidx_ref[...]                                   # (1, MB) int32
    cc = cc_ref[...]                                       # (1, MB) f32

    # Single iota reused for both one-hots.
    vocab_ids = lax.broadcasted_iota(jnp.int32, (vocab, mb), 0)   # (V, MB)

    # ---- fused gathers on the MXU, built & consumed sequentially ------------
    # (E_pad+1, V) @ (V, MB) -> (E_pad+1, MB): rows [0, E) embeddings^T,
    # rows [E, E_pad) zero padding, row E_pad the bias.
    oh_f = (vocab_ids == fidx).astype(jnp.float32)
    gf = jnp.dot(ftab_ref[...], oh_f, preferred_element_type=jnp.float32)

    oh_c = (vocab_ids == cidx).astype(jnp.float32)
    gc = jnp.dot(ctab_ref[...], oh_c, preferred_element_type=jnp.float32)

    fe_t = gf[:e_pad, :]                                   # (E_pad, MB)
    ce_t = gc[:e_pad, :]                                   # (E_pad, MB)
    fb = gf[e_pad:, :]                                     # (1, MB) focal bias
    cb = gc[e_pad:, :]                                     # (1, MB) context bias

    # ---- per-example terms, all lane-dense (1, MB) ---------------------------
    prod = jnp.sum(fe_t * ce_t, axis=0, keepdims=True)     # sum(focal*context, dim=1)
    logc = jnp.log(cc)                                     # log(X); X>0 assumed (as in module)
    weight = jnp.minimum(jnp.exp(0.75 * (logc - log_x_max)), 1.0)

    a = prod + logc                                        # "j" term of the broadcast
    b = fb + cb                                            # "i" term of the broadcast
    wa = weight * a

    # Pack the five partial reductions into one (8, MB) buffer -> single
    # cross-lane reduce, accumulated into the resident (8, 1) scratch.
    packed = jnp.concatenate(
        [wa * a, wa, weight, b, b * b, jnp.zeros((3, mb), jnp.float32)], axis=0)
    acc_ref[...] += jnp.sum(packed, axis=1, keepdims=True)   # (8, 1)

    @pl.when(step == pl.num_programs(0) - 1)
    def _():
        acc = acc_ref[...]
        s_wa2 = acc[0:1, :]
        s_wa = acc[1:2, :]
        s_w = acc[2:3, :]
        s_b = acc[3:4, :]
        s_b2 = acc[4:5, :]
        # sum_ij w_j (a_j + b_i)^2 over the FULL batch, never forming (B, B).
        total = n_total * s_wa2 + 2.0 * s_b * s_wa + s_b2 * s_w
        out_ref[...] = (total * (1.0 / (n_total * n_total))).astype(out_ref.dtype)


def prepare_fused_table(emb_table, bias_table):
    """Hoisted parameter prep (do once, or once per optimizer step).

    Returns the bias-fused, transposed table of shape (E_pad + 1, V) with the
    embedding rows zero-padded so the bias row starts on a sublane multiple of 8.
    """
    vocab, embed = emb_table.shape
    e_pad = ((embed + 7) // 8) * 8
    parts = [emb_table.T.astype(jnp.float32)]
    if e_pad != embed:
        parts.append(jnp.zeros((e_pad - embed, vocab), jnp.float32))
    parts.append(bias_table.T.astype(jnp.float32))          # (1, V) bias row
    return jnp.concatenate(parts, axis=0)                   # (E_pad + 1, V)


def glove_loss_pallas(ftab_fused, ctab_fused, focal_input, context_input,
                      cooc_count, x_max, micro_batch=256):
    """Loss from pre-fused (E_pad+1, V) tables; gathers run in-kernel on the MXU."""
    rows, vocab = ftab_fused.shape
    n_total = focal_input.shape[0]
    micro_batch = min(micro_batch, n_total)
    assert n_total % micro_batch == 0, "batch must be a multiple of micro_batch"
    num_steps = n_total // micro_batch
    log_x_max = math.log(float(max(x_max, 1)))

    # Lane-dense (1, B) layouts for the per-example vectors.
    fidx = focal_input.reshape(1, n_total).astype(jnp.int32)
    cidx = context_input.reshape(1, n_total).astype(jnp.int32)
    cc = cooc_count.reshape(1, n_total).astype(jnp.float32)

    kernel = functools.partial(_glove_loss_kernel, log_x_max, float(n_total))

    cost = pl.CostEstimate(
        flops=int(2 * 2 * rows * vocab * n_total + 12 * n_total),
        transcendentals=int(2 * n_total),
        bytes_accessed=int(2 * rows * vocab * 4 + 3 * n_total * 4 + 4),
    )

    out = pl.pallas_call(
        kernel,
        out_shape=jax.ShapeDtypeStruct((1, 1), jnp.float32),
        grid_spec=pltpu.PrefetchScalarGridSpec(
            num_scalar_prefetch=0,
            grid=(num_steps,),
            in_specs=[
                pl.BlockSpec((1, micro_batch), lambda i: (0, i)),   # focal ids
                pl.BlockSpec((1, micro_batch), lambda i: (0, i)),   # context ids
                pl.BlockSpec((1, micro_batch), lambda i: (0, i)),   # counts
                pl.BlockSpec((rows, vocab), lambda i: (0, 0)),      # focal table (resident)
                pl.BlockSpec((rows, vocab), lambda i: (0, 0)),      # context table (resident)
            ],
            out_specs=pl.BlockSpec((1, 1), lambda i: (0, 0)),
            scratch_shapes=[pltpu.VMEM((8, 1), jnp.float32)],        # 5 running sums
        ),
        compiler_params=pltpu.CompilerParams(
            # Grid axis carries the loss accumulator -> reduction axis.
            dimension_semantics=("arbitrary",),
            vmem_limit_bytes=32 * 1024 * 1024,
        ),
        cost_estimate=cost,
    )(fidx, cidx, cc, ftab_fused, ctab_fused)
    return out[0, 0]


@functools.partial(jax.jit, static_argnames=("x_max", "micro_batch"))
def glove_loss_step(ftab_fused, ctab_fused, focal_input, context_input,
                    cooc_count, x_max, micro_batch=256):
    """Per-step path: consumes already-fused tables (transpose/concat hoisted)."""
    return glove_loss_pallas(ftab_fused, ctab_fused, focal_input, context_input,
                             cooc_count, x_max, micro_batch=micro_batch)


def glove_loss_reference(focal_table, context_table, focal_bias_table,
                         context_bias_table, focal_input, context_input,
                         cooc_count, x_max):
    """Pure-JAX reference reproducing the PyTorch forward exactly (in f32)."""
    x_max = float(max(x_max, 1))
    fe = jnp.take(focal_table, focal_input, axis=0)            # (B, E)
    ce = jnp.take(context_table, context_input, axis=0)        # (B, E)
    fb = jnp.take(focal_bias_table, focal_input, axis=0)       # (B, 1)
    cb = jnp.take(context_bias_table, context_input, axis=0)   # (B, 1)
    weight = jnp.minimum(jnp.power(cooc_count / x_max, 0.75), 1.0)   # (B,)
    prod = jnp.sum(fe * ce, axis=1)                            # (B,)
    logc = jnp.log(cooc_count)                                 # (B,)
    # PyTorch broadcast: (B,) + (B,1) + (B,1) + (B,) -> (B, B)
    dist = prod + fb + cb + logc                               # (B, B)
    single = weight * dist * dist                              # weight[j] * dist[i,j]^2
    return jnp.mean(single)


if __name__ == "__main__":
    EMBEDDING_SIZE = 32
    VOCAB_SIZE = 256
    X_MAX = 100
    BATCH = 512          # total batch; kernel iterates it in micro-batches
    MICRO_BATCH = 256    # N=256 per gather matmul (fills v6e/v7x MXU width)

    key = jax.random.PRNGKey(0)
    k_fe, k_ce, k_fb, k_cb, k_fi, k_ci, k_cc = jax.random.split(key, 7)

    # Deterministic "parameters" (nn.Embedding default init ~ N(0, 1)).
    focal_table = jax.random.normal(k_fe, (VOCAB_SIZE, EMBEDDING_SIZE), jnp.float32)
    context_table = jax.random.normal(k_ce, (VOCAB_SIZE, EMBEDDING_SIZE), jnp.float32)
    focal_bias_table = jax.random.normal(k_fb, (VOCAB_SIZE, 1), jnp.float32)
    context_bias_table = jax.random.normal(k_cb, (VOCAB_SIZE, 1), jnp.float32)

    # Inputs to forward().
    focal_input = jax.random.randint(k_fi, (BATCH,), 0, VOCAB_SIZE, jnp.int32)
    context_input = jax.random.randint(k_ci, (BATCH,), 0, VOCAB_SIZE, jnp.int32)
    cooc_count = jax.random.uniform(k_cc, (BATCH,), jnp.float32,
                                    minval=1.0, maxval=150.0)

    # Hoisted (per-parameter-update) prep: bias-fused, transposed tables.
    ftab_fused = jax.block_until_ready(
        prepare_fused_table(focal_table, focal_bias_table))
    ctab_fused = jax.block_until_ready(
        prepare_fused_table(context_table, context_bias_table))

    loss = glove_loss_step(ftab_fused, ctab_fused, focal_input, context_input,
                           cooc_count, X_MAX, micro_batch=MICRO_BATCH)
    loss = jax.block_until_ready(loss)

    ref = glove_loss_reference(focal_table, context_table, focal_bias_table,
                               context_bias_table, focal_input, context_input,
                               cooc_count, X_MAX)
    ref = jax.block_until_ready(ref)

    assert jnp.isfinite(loss), f"non-finite loss: {loss}"
    assert jnp.allclose(loss, ref, rtol=1e-3, atol=1e-3), (loss, ref)
    print("KERNEL_OK")
</pallas_src>

<mosaic_0001>
module attributes {stable_mosaic.version = 11 : i64} {
  func.func @_glove_loss_kernel(%arg0: i32, %arg1: memref<1x256xi32, #tpu.memory_space<vmem>>, %arg2: memref<1x256xi32, #tpu.memory_space<vmem>>, %arg3: memref<1x256xf32, #tpu.memory_space<vmem>>, %arg4: memref<33x256xf32, #tpu.memory_space<vmem>>, %arg5: memref<33x256xf32, #tpu.memory_space<vmem>>, %arg6: memref<1x1xf32, #tpu.memory_space<vmem>>, %arg7: memref<8x1xf32, #tpu.memory_space<vmem>>) attributes {dimension_semantics = [#tpu.dimension_semantics<arbitrary>], iteration_bounds = array<i64: 2>, scalar_prefetch = 0 : i64, scratch_operands = 1 : i64, tpu.core_type = #tpu.core_type<tc>, window_params = [{transform_indices = @transform_0, window_bounds = array<i64: 1, 256>}, {transform_indices = @transform_1, window_bounds = array<i64: 1, 256>}, {transform_indices = @transform_2, window_bounds = array<i64: 1, 256>}, {pipeline_mode = #tpu.pipeline_mode<synchronous>, transform_indices = @transform_3, window_bounds = array<i64: 33, 256>}, {pipeline_mode = #tpu.pipeline_mode<synchronous>, transform_indices = @transform_4, window_bounds = array<i64: 33, 256>}, {pipeline_mode = #tpu.pipeline_mode<synchronous>, transform_indices = @transform_5, window_bounds = array<i64: 1, 1>}]} {
    %c0_i32 = arith.constant 0 : i32
    %0 = arith.cmpi eq, %arg0, %c0_i32 : i32
    %1 = arith.extui %0 : i1 to i32
    %c0_i32_0 = arith.constant 0 : i32
    %2 = arith.cmpi ne, %1, %c0_i32_0 : i32
    scf.if %2 {
      %cst_22 = arith.constant 0.000000e+00 : f32
      %49 = vector.broadcast %cst_22 : f32 to vector<8x1xf32>
      %c0_23 = arith.constant 0 : index
      %c0_24 = arith.constant 0 : index
      %50 = vector.load %arg7[%c0_23, %c0_24] : memref<8x1xf32, #tpu.memory_space<vmem>>, vector<8x1xf32>
      tpu.vector_store %arg7[%c0_23, %c0_24], %49 {strides = array<i32>} : memref<8x1xf32, #tpu.memory_space<vmem>>, vector<8x1xf32>,
    } else {
    }
    %c0 = arith.constant 0 : index
    %c0_1 = arith.constant 0 : index
    %3 = vector.load %arg1[%c0, %c0_1] : memref<1x256xi32, #tpu.memory_space<vmem>>, vector<1x256xi32>
    %c0_2 = arith.constant 0 : index
    %c0_3 = arith.constant 0 : index
    %4 = vector.load %arg2[%c0_2, %c0_3] : memref<1x256xi32, #tpu.memory_space<vmem>>, vector<1x256xi32>
    %c0_4 = arith.constant 0 : index
    %c0_5 = arith.constant 0 : index
    %5 = vector.load %arg3[%c0_4, %c0_5] : memref<1x256xf32, #tpu.memory_space<vmem>>, vector<1x256xf32>
    %6 = tpu.iota {dimensions = array<i32: 0>} : vector<256x256xi32>
    %7 = vector.broadcast %3 : vector<1x256xi32> to vector<256x256xi32>
    %8 = arith.cmpi eq, %6, %7 : vector<256x256xi32>
    %9 = arith.extui %8 : vector<256x256xi1> to vector<256x256xi32>
    %10 = arith.sitofp %9 : vector<256x256xi32> to vector<256x256xf32>
    %c0_6 = arith.constant 0 : index
    %c0_7 = arith.constant 0 : index
    %11 = vector.load %arg4[%c0_6, %c0_7] : memref<33x256xf32, #tpu.memory_space<vmem>>, vector<33x256xf32>
    %cst = arith.constant dense<0.000000e+00> : vector<33x256xf32>
    %12 = tpu.matmul %11, %10, %cst {dimension_numbers = #tpu.dot_dimension_numbers<[1], [0], [0], [1], [0, 0, 1, 1], [], []>} : vector<33x256xf32>, vector<256x256xf32>, vector<33x256xf32> -> vector<33x256xf32>
    %13 = vector.broadcast %4 : vector<1x256xi32> to vector<256x256xi32>
    %14 = arith.cmpi eq, %6, %13 : vector<256x256xi32>
    %15 = arith.extui %14 : vector<256x256xi1> to vector<256x256xi32>
    %16 = arith.sitofp %15 : vector<256x256xi32> to vector<256x256xf32>
    %c0_8 = arith.constant 0 : index
    %c0_9 = arith.constant 0 : index
    %17 = vector.load %arg5[%c0_8, %c0_9] : memref<33x256xf32, #tpu.memory_space<vmem>>, vector<33x256xf32>
    %cst_10 = arith.constant dense<0.000000e+00> : vector<33x256xf32>
    %18 = tpu.matmul %17, %16, %cst_10 {dimension_numbers = #tpu.dot_dimension_numbers<[1], [0], [0], [1], [0, 0, 1, 1], [], []>} : vector<33x256xf32>, vector<256x256xf32>, vector<33x256xf32> -> vector<33x256xf32>
    %19 = vector.extract_strided_slice %12 {offsets = [0, 0], sizes = [32, 256], strides = [1, 1]} : vector<33x256xf32> to vector<32x256xf32>
    %20 = vector.extract_strided_slice %18 {offsets = [0, 0], sizes = [32, 256], strides = [1, 1]} : vector<33x256xf32> to vector<32x256xf32>
    %21 = vector.extract_strided_slice %12 {offsets = [32, 0], sizes = [1, 256], strides = [1, 1]} : vector<33x256xf32> to vector<1x256xf32>
    %22 = vector.extract_strided_slice %18 {offsets = [32, 0], sizes = [1, 256], strides = [1, 1]} : vector<33x256xf32> to vector<1x256xf32>
    %23 = arith.mulf %19, %20 : vector<32x256xf32>
    %cst_11 = arith.constant dense<0.000000e+00> : vector<256xf32>
    %24 = vector.multi_reduction <add>, %23, %cst_11 [0] : vector<32x256xf32> to vector<256xf32>
    %25 = vector.shape_cast %24 : vector<256xf32> to vector<1x256xf32>
    %26 = math.log %5 : vector<1x256xf32>
    %cst_12 = arith.constant 4.60517025 : f32
    %27 = vector.broadcast %cst_12 : f32 to vector<1x256xf32>
    %28 = arith.subf %26, %27 : vector<1x256xf32>
    %cst_13 = arith.constant 7.500000e-01 : f32
    %29 = vector.broadcast %cst_13 : f32 to vector<1x256xf32>
    %30 = arith.mulf %29, %28 : vector<1x256xf32>
    %31 = math.exp %30 : vector<1x256xf32>
    %cst_14 = arith.constant 1.000000e+00 : f32
    %32 = vector.broadcast %cst_14 : f32 to vector<1x256xf32>
    %33 = arith.minimumf %31, %32 : vector<1x256xf32>
    %34 = arith.addf %25, %26 : vector<1x256xf32>
    %35 = arith.addf %21, %22 : vector<1x256xf32>
    %36 = arith.mulf %33, %34 : vector<1x256xf32>
    %37 = arith.mulf %36, %34 : vector<1x256xf32>
    %38 = arith.mulf %35, %35 : vector<1x256xf32>
    %cst_15 = arith.constant 0.000000e+00 : f32
    %39 = vector.broadcast %cst_15 : f32 to vector<3x256xf32>
    %40 = tpu.concatenate %37, %36, %33, %35, %38, %39 in 0 : vector<1x256xf32>, vector<1x256xf32>, vector<1x256xf32>, vector<1x256xf32>, vector<1x256xf32>, vector<3x256xf32> -> vector<8x256xf32>
    %c0_16 = arith.constant 0 : index
    %c0_17 = arith.constant 0 : index
    %41 = vector.load %arg7[%c0_16, %c0_17] : memref<8x1xf32, #tpu.memory_space<vmem>>, vector<8x1xf32>
    %cst_18 = arith.constant dense<0.000000e+00> : vector<8xf32>
    %42 = vector.multi_reduction <add>, %40, %cst_18 [1] : vector<8x256xf32> to vector<8xf32>
    %43 = vector.shape_cast %42 : vector<8xf32> to vector<8x1xf32>
    %44 = arith.addf %41, %43 : vector<8x1xf32>
    %c0_19 = arith.constant 0 : index
    %c0_20 = arith.constant 0 : index
    %45 = vector.load %arg7[%c0_19, %c0_20] : memref<8x1xf32, #tpu.memory_space<vmem>>, vector<8x1xf32>
    tpu.vector_store %arg7[%c0_19, %c0_20], %44 {strides = array<i32>} : memref<8x1xf32, #tpu.memory_space<vmem>>, vector<8x1xf32>,
    %c1_i32 = arith.constant 1 : i32
    %46 = arith.cmpi eq, %arg0, %c1_i32 : i32
    %47 = arith.extui %46 : i1 to i32
    %c0_i32_21 = arith.constant 0 : i32
    %48 = arith.cmpi ne, %47, %c0_i32_21 : i32
    scf.if %48 {
      %c0_22 = arith.constant 0 : index
      %c0_23 = arith.constant 0 : index
      %49 = vector.load %arg7[%c0_22, %c0_23] : memref<8x1xf32, #tpu.memory_space<vmem>>, vector<8x1xf32>
      %50 = vector.extract_strided_slice %49 {offsets = [0, 0], sizes = [1, 1], strides = [1, 1]} : vector<8x1xf32> to vector<1x1xf32>
      %51 = vector.extract_strided_slice %49 {offsets = [1, 0], sizes = [1, 1], strides = [1, 1]} : vector<8x1xf32> to vector<1x1xf32>
      %52 = vector.extract_strided_slice %49 {offsets = [2, 0], sizes = [1, 1], strides = [1, 1]} : vector<8x1xf32> to vector<1x1xf32>
      %53 = vector.extract_strided_slice %49 {offsets = [3, 0], sizes = [1, 1], strides = [1, 1]} : vector<8x1xf32> to vector<1x1xf32>
      %54 = vector.extract_strided_slice %49 {offsets = [4, 0], sizes = [1, 1], strides = [1, 1]} : vector<8x1xf32> to vector<1x1xf32>
      %cst_24 = arith.constant 5.120000e+02 : f32
      %55 = vector.broadcast %cst_24 : f32 to vector<1x1xf32>
      %56 = arith.mulf %55, %50 : vector<1x1xf32>
      %cst_25 = arith.constant 2.000000e+00 : f32
      %57 = vector.broadcast %cst_25 : f32 to vector<1x1xf32>
      %58 = arith.mulf %57, %53 : vector<1x1xf32>
      %59 = arith.mulf %58, %51 : vector<1x1xf32>
      %60 = arith.addf %56, %59 : vector<1x1xf32>
      %61 = arith.mulf %54, %52 : vector<1x1xf32>
      %62 = arith.addf %60, %61 : vector<1x1xf32>
      %cst_26 = arith.constant 3.81469727E-6 : f32
      %63 = vector.broadcast %cst_26 : f32 to vector<1x1xf32>
      %64 = arith.mulf %62, %63 : vector<1x1xf32>
      %c0_27 = arith.constant 0 : index
      %c0_28 = arith.constant 0 : index
      %65 = vector.load %arg6[%c0_27, %c0_28] : memref<1x1xf32, #tpu.memory_space<vmem>>, vector<1x1xf32>
      tpu.vector_store %arg6[%c0_27, %c0_28], %64 {strides = array<i32>} : memref<1x1xf32, #tpu.memory_space<vmem>>, vector<1x1xf32>,
    } else {
    }
    return
  }
  func.func @transform_0(%arg0: i32) -> (i32, i32) {
    %c0_i32 = arith.constant 0 : i32
    %c0_i32_0 = arith.constant 0 : i32
    return %c0_i32, %arg0 : i32, i32
  }
  func.func @transform_1(%arg0: i32) -> (i32, i32) {
    %c0_i32 = arith.constant 0 : i32
    %c0_i32_0 = arith.constant 0 : i32
    return %c0_i32, %arg0 : i32, i32
  }
  func.func @transform_2(%arg0: i32) -> (i32, i32) {
    %c0_i32 = arith.constant 0 : i32
    %c0_i32_0 = arith.constant 0 : i32
    return %c0_i32, %arg0 : i32, i32
  }
  func.func @transform_3(%arg0: i32) -> (i32, i32) {
    %c0_i32 = arith.constant 0 : i32
    %c0_i32_0 = arith.constant 0 : i32
    %c0_i32_1 = arith.constant 0 : i32
    return %c0_i32, %c0_i32_0 : i32, i32
  }
  func.func @transform_4(%arg0: i32) -> (i32, i32) {
    %c0_i32 = arith.constant 0 : i32
    %c0_i32_0 = arith.constant 0 : i32
    %c0_i32_1 = arith.constant 0 : i32
    return %c0_i32, %c0_i32_0 : i32, i32
  }
  func.func @transform_5(%arg0: i32) -> (i32, i32) {
    %c0_i32 = arith.constant 0 : i32
    %c0_i32_0 = arith.constant 0 : i32
    %c0_i32_1 = arith.constant 0 : i32
    return %c0_i32, %c0_i32_0 : i32, i32
  }
}

</mosaic_0001>

<llo_original>
// kernel: glove_loss_step.1
$region0: #{glove_loss_step.1}
  #allocation0 [shape = 'u32[]', space=smem, size = 0x4, offset = 0x4, fixed_abs, tag = 'smem constant byte address 0x4 - core index']
  #allocation1 [shape = 'u32[144,128]{1,0:T(1,128)}', space=vmem, size = 0x12000, scoped, tag = 'internal scratch']
  #allocation2 [shape = 'f32[8,1]{1,0:T(8,128)}', space=vmem, size = 0x1000, scoped, tag = 'scratch operand']
  %s0 = inlined_call_operand.vmem [shape: s32[1,512], index: 0, kind: input, shape index: {}]
  %s1 = inlined_call_operand.vmem [shape: s32[1,512], index: 1, kind: input, shape index: {}]
  %s2 = inlined_call_operand.vmem [shape: f32[1,512], index: 2, kind: input, shape index: {}]
  %s3 = inlined_call_operand.hbm [shape: f32[33,256], index: 3, kind: input, shape index: {}]
  %s4 = inlined_call_operand.hbm [shape: f32[33,256], index: 4, kind: input, shape index: {}]
  %s5 = inlined_call_operand.hbm [shape: f32[1,1], index: 5, kind: output, shape index: {}]
  %s6 = sld [smem:[#allocation0]]
  $region69: #{glove_loss_step.1} parent=0
    _
  %s8 = ssub.s32 1, %s6
  %s9 = scalar_select 0, %s8, %s6
  $region1: #{glove_loss_step.1} parent=0
    #allocation3 [shape = 'u8[40960]{0}', space=vmem, size = 0xa000, scoped, tag = 'input window, operand 3, single buffered']
    #allocation4 [shape = 's32[2]{0}', space=sflag, size = 0x8, scoped, tag = 'scoped memory for glove_loss_step.1']
    #allocation5 [shape = 's32[2]{0}', space=sflag, size = 0x8, scoped, tag = 'scoped memory for glove_loss_step.1']
    #allocation6 [shape = 'u8[40960]{0}', space=vmem, size = 0xa000, scoped, tag = 'input window, operand 4, single buffered']
    #allocation7 [shape = 's32[1]{0}', space=sflag, size = 0x4, scoped, tag = 'scoped memory for glove_loss_step.1']
    #allocation8 [shape = 'u8[512]{0}', space=vmem, size = 0x400, scoped, tag = 'output window, operand 0, single buffered']
    %10 = vsyncpa [#allocation4], 0
    %11 = vsyncpa [#allocation7], 0
    %12 = vsyncpa [#allocation5], 0
    loop: start=0, step=1, limit=4
    $region2: #{glove_loss_step.1} parent=1 // loop_pre_header
      _
    $region3: #{glove_loss_step.1} parent=1 // loop_header
      %s14 = sphi 0, %s18
      %p15 = scmp.ge.s32.totalorder %s14, 4
      %s24 = sphi 0, %s26
      %s27 = sphi 0, %s24
      %s28 = sphi 0, %s27
      %s44 = sphi 0, %s28
      %s50 = sphi 0, %s52
      %s53 = sphi 0, %s50
      %s54 = sphi 0, %s53
      %s70 = sphi 0, %s54
      %s76 = sphi 0, %s78
      %s79 = sphi 0, %s76
      %s80 = sphi 0, %s79
      %s96 = sphi 0, %s80
      %s100 = sphi 0, %s100
      %s102 = sphi 0, %s100
      %s103 = sphi 0, %s102
      %s117 = sphi 0, %s103
      %s121 = sphi 0, %s121
      %s123 = sphi 0, %s121
      %s124 = sphi 0, %s123
      %s138 = sphi 0, %s124
      %s142 = sphi 0, %s142
      %s144 = sphi 0, %s142
      %s145 = sphi 0, %s144
      %s159 = sphi 0, %s145
    $region4: #{glove_loss_step.1} parent=1 // loop_header_branch
      %17 = sbr.rel (%p15) target = $region8
    $region5: #{glove_loss_step.1} parent=1 // loop_body
      %s19 = ssub.s32 %s14, 1
      %s20 = ssub.s32 %s14, 2
      %s21 = sadd.s32 %s14, 1
      %s22 = ssub.s32 %s14, %s21
      %p23 = scmp.eq.s32.totalorder %s22, 0
      %s25 = sadd.s32 %s24, 1
      %s26 = scalar_select %p23, %s24, %s25
      %p29 = pneg %p23
      %p30 = scmp.eq.s32.totalorder %s14, 1
      %p31 = por %p29, %p30
      %p32 = scmp.ne.s32.totalorder %s24, %s27
      %p33 = scmp.eq.s32.totalorder %s14, 0
      %p34 = por %p32, %p33
      %p35 = scmp.ne.s32.totalorder %s24, %s27
      %p36 = scmp.eq.s32.totalorder %s19, 1
      %p37 = por %p35, %p36
      %p38 = scmp.ne.s32.totalorder %s27, %s28
      %p39 = scmp.eq.s32.totalorder %s19, 0
      %p40 = por %p38, %p39
      %p41 = scmp.ne.s32.totalorder %s27, %s28
      %p42 = scmp.eq.s32.totalorder %s20, 1
      %p43 = por %p41, %p42
      %p45 = scmp.ne.s32.totalorder %s28, %s44
      %p46 = scmp.eq.s32.totalorder %s20, 0
      %p47 = por %p45, %p46
      %s48 = ssub.s32 %s14, %s21
      %p49 = scmp.eq.s32.totalorder %s48, 0
      %s51 = sadd.s32 %s50, 1
      %s52 = scalar_select %p49, %s50, %s51
      %p55 = pneg %p49
      %p56 = scmp.eq.s32.totalorder %s14, 1
      %p57 = por %p55, %p56
      %p58 = scmp.ne.s32.totalorder %s50, %s53
      %p59 = scmp.eq.s32.totalorder %s14, 0
      %p60 = por %p58, %p59
      %p61 = scmp.ne.s32.totalorder %s50, %s53
      %p62 = scmp.eq.s32.totalorder %s19, 1
      %p63 = por %p61, %p62
      %p64 = scmp.ne.s32.totalorder %s53, %s54
      %p65 = scmp.eq.s32.totalorder %s19, 0
      %p66 = por %p64, %p65
      %p67 = scmp.ne.s32.totalorder %s53, %s54
      %p68 = scmp.eq.s32.totalorder %s20, 1
      %p69 = por %p67, %p68
      %p71 = scmp.ne.s32.totalorder %s54, %s70
      %p72 = scmp.eq.s32.totalorder %s20, 0
      %p73 = por %p71, %p72
      %s74 = ssub.s32 %s14, %s21
      %p75 = scmp.eq.s32.totalorder %s74, 0
      %s77 = sadd.s32 %s76, 1
      %s78 = scalar_select %p75, %s76, %s77
      %p81 = pneg %p75
      %p82 = scmp.eq.s32.totalorder %s14, 1
      %p83 = por %p81, %p82
      %p84 = scmp.ne.s32.totalorder %s76, %s79
      %p85 = scmp.eq.s32.totalorder %s14, 0
      %p86 = por %p84, %p85
      %p87 = scmp.ne.s32.totalorder %s76, %s79
      %p88 = scmp.eq.s32.totalorder %s19, 1
      %p89 = por %p87, %p88
      %p90 = scmp.ne.s32.totalorder %s79, %s80
      %p91 = scmp.eq.s32.totalorder %s19, 0
      %p92 = por %p90, %p91
      %p93 = scmp.ne.s32.totalorder %s79, %s80
      %p94 = scmp.eq.s32.totalorder %s20, 1
      %p95 = por %p93, %p94
      %p97 = scmp.ne.s32.totalorder %s80, %s96
      %p98 = scmp.eq.s32.totalorder %s20, 0
      %p99 = por %p97, %p98
      %s101 = sadd.s32 %s100, 1
      %p104 = scmp.eq.s32.totalorder %s14, 1
      %p105 = scmp.ne.s32.totalorder %s100, %s102
      %p106 = scmp.eq.s32.totalorder %s14, 0
      %p107 = por %p105, %p106
      %p108 = scmp.ne.s32.totalorder %s100, %s102
      %p109 = scmp.eq.s32.totalorder %s19, 1
      %p110 = por %p108, %p109
      %p111 = scmp.ne.s32.totalorder %s102, %s103
      %p112 = scmp.eq.s32.totalorder %s19, 0
      %p113 = por %p111, %p112
      %p114 = scmp.ne.s32.totalorder %s102, %s103
      %p115 = scmp.eq.s32.totalorder %s20, 1
      %p116 = por %p114, %p115
      %p118 = scmp.ne.s32.totalorder %s103, %s117
      %p119 = scmp.eq.s32.totalorder %s20, 0
      %p120 = por %p118, %p119
      %s122 = sadd.s32 %s121, 1
      %p125 = scmp.eq.s32.totalorder %s14, 1
      %p126 = scmp.ne.s32.totalorder %s121, %s123
      %p127 = scmp.eq.s32.totalorder %s14, 0
      %p128 = por %p126, %p127
      %p129 = scmp.ne.s32.totalorder %s121, %s123
      %p130 = scmp.eq.s32.totalorder %s19, 1
      %p131 = por %p129, %p130
      %p132 = scmp.ne.s32.totalorder %s123, %s124
      %p133 = scmp.eq.s32.totalorder %s19, 0
      %p134 = por %p132, %p133
      %p135 = scmp.ne.s32.totalorder %s123, %s124
      %p136 = scmp.eq.s32.totalorder %s20, 1
      %p137 = por %p135, %p136
      %p139 = scmp.ne.s32.totalorder %s124, %s138
      %p140 = scmp.eq.s32.totalorder %s20, 0
      %p141 = por %p139, %p140
      %s143 = sadd.s32 %s142, 1
      %p146 = scmp.eq.s32.totalorder %s14, 1
      %p147 = scmp.ne.s32.totalorder %s142, %s144
      %p148 = scmp.eq.s32.totalorder %s14, 0
      %p149 = por %p147, %p148
      %p150 = scmp.ne.s32.totalorder %s142, %s144
      %p151 = scmp.eq.s32.totalorder %s19, 1
      %p152 = por %p150, %p151
      %p153 = scmp.ne.s32.totalorder %s144, %s145
      %p154 = scmp.eq.s32.totalorder %s19, 0
      %p155 = por %p153, %p154
      %p156 = scmp.ne.s32.totalorder %s144, %s145
      %p157 = scmp.eq.s32.totalorder %s20, 1
      %p158 = por %p156, %p157
      %p160 = scmp.ne.s32.totalorder %s145, %s159
      %p161 = scmp.eq.s32.totalorder %s20, 0
      %p162 = por %p160, %p161
      %p163 = scmp.le.s32.totalorder 1, %s14
      %p164 = scmp.lt.s32.totalorder %s14, 3
      %p165 = pnand %p163, %p164
      %p166 = pneg %p165
      // Predicated region
      $region9: #{glove_loss_step.1} parent=5 // pred_check
        _
      $region10: #{glove_loss_step.1} parent=5 // pred_check_branch
        %168 = sbr.rel (%p165) target = $region12
      $region11: #{glove_loss_step.1} parent=5 // pred_region
        %s169 = ssub.s32 %s14, 1
        // Predicated region
        $region13: #{glove_loss_step.1} parent=11 // pred_check
          %p170 = pneg %p113
        $region14: #{glove_loss_step.1} parent=11 // pred_check_branch
          %172 = sbr.rel (%p170) target = $region16
        $region15: #{glove_loss_step.1} parent=11 // pred_region
          %s174 = ssub.s32 1280, 1280
          %175 = vsyncadd [#allocation4], %s174
          %s176 = sshll.u32 [#allocation3], 4
          %s177 = int_to_ptr.vmem [resolvable:$true] %s176
          %182 = dma.hbm_to_vmem [thread:$0]  %s3, 1280, %s177, [#allocation4], 256, 256, 16
        $region16: #{glove_loss_step.1} parent=11 // pred_fallthru
          _
        // Predicated region
        $region17: #{glove_loss_step.1} parent=11 // pred_check
          %p183 = pneg %p134
        $region18: #{glove_loss_step.1} parent=11 // pred_check_branch
          %185 = sbr.rel (%p183) target = $region20
        $region19: #{glove_loss_step.1} parent=11 // pred_region
          %s187 = ssub.s32 1280, 1280
          %188 = vsyncadd [#allocation7], %s187
          %s189 = sshll.u32 [#allocation6], 4
          %s190 = int_to_ptr.vmem [resolvable:$true] %s189
          %195 = dma.hbm_to_vmem [thread:$0]  %s4, 1280, %s190, [#allocation7], 256, 256, 16
        $region20: #{glove_loss_step.1} parent=11 // pred_fallthru
          _
      $region12: #{glove_loss_step.1} parent=5 // pred_fallthru
        _
      %p196 = scmp.lt.s32.totalorder %s14, 2
      // Predicated region
      $region21: #{glove_loss_step.1} parent=5 // pred_check
        %p197 = pneg %p196
      $region22: #{glove_loss_step.1} parent=5 // pred_check_branch
        %199 = sbr.rel (%p197) target = $region24
      $region23: #{glove_loss_step.1} parent=5 // pred_region
        // Predicated region
        $region25: #{glove_loss_step.1} parent=23 // pred_check
          %p200 = pneg %p34
        $region26: #{glove_loss_step.1} parent=23 // pred_check_branch
          %202 = sbr.rel (%p200) target = $region28
        $region27: #{glove_loss_step.1} parent=23 // pred_region
          %s203 = smul.u32 2, %s14
          %p204 = scmp.lt.s32.totalorder %s203, 3
          %s205 = scalar_select %p204, %s203, 3
          %s206 = scalar_lea.vmem %s0, %s205
          %s207 = smul.u32 2, %s14
        $region28: #{glove_loss_step.1} parent=23 // pred_fallthru
          _
        // Predicated region
        $region29: #{glove_loss_step.1} parent=23 // pred_check
          %p208 = pneg %p60
        $region30: #{glove_loss_step.1} parent=23 // pred_check_branch
          %210 = sbr.rel (%p208) target = $region32
        $region31: #{glove_loss_step.1} parent=23 // pred_region
          %s211 = smul.u32 2, %s14
          %p212 = scmp.lt.s32.totalorder %s211, 3
          %s213 = scalar_select %p212, %s211, 3
          %s214 = scalar_lea.vmem %s1, %s213
          %s215 = smul.u32 2, %s14
        $region32: #{glove_loss_step.1} parent=23 // pred_fallthru
          _
        // Predicated region
        $region33: #{glove_loss_step.1} parent=23 // pred_check
          %p216 = pneg %p86
        $region34: #{glove_loss_step.1} parent=23 // pred_check_branch
          %218 = sbr.rel (%p216) target = $region36
        $region35: #{glove_loss_step.1} parent=23 // pred_region
          %s219 = smul.u32 2, %s14
          %p220 = scmp.lt.s32.totalorder %s219, 3
          %s221 = scalar_select %p220, %s219, 3
          %s222 = scalar_lea.vmem %s2, %s221
          %s223 = smul.u32 2, %s14
        $region36: #{glove_loss_step.1} parent=23 // pred_fallthru
          _
      $region24: #{glove_loss_step.1} parent=5 // pred_fallthru
        _
      %p224 = scmp.le.s32.totalorder 1, %s14
      %p225 = scmp.lt.s32.totalorder %s14, 3
      %p226 = pnand %p224, %p225
      %p227 = pneg %p226
      // Predicated region
      $region37: #{glove_loss_step.1} parent=5 // pred_check
        _
      $region38: #{glove_loss_step.1} parent=5 // pred_check_branch
        %229 = sbr.rel (%p226) target = $region40
      $region39: #{glove_loss_step.1} parent=5 // pred_region
        %s230 = ssub.s32 %s14, 1
        // Predicated region
        $region41: #{glove_loss_step.1} parent=39 // pred_check
          %p231 = pneg %p113
        $region42: #{glove_loss_step.1} parent=39 // pred_check_branch
          %233 = sbr.rel (%p231) target = $region44
        $region43: #{glove_loss_step.1} parent=39 // pred_region
          %234 = dma.done [#allocation4], 1280
        $region44: #{glove_loss_step.1} parent=39 // pred_fallthru
          _
        // Predicated region
        $region45: #{glove_loss_step.1} parent=39 // pred_check
          %p235 = pneg %p134
        $region46: #{glove_loss_step.1} parent=39 // pred_check_branch
          %237 = sbr.rel (%p235) target = $region48
        $region47: #{glove_loss_step.1} parent=39 // pred_region
          %238 = dma.done [#allocation7], 1280
        $region48: #{glove_loss_step.1} parent=39 // pred_fallthru
          _
        %s239 = smul.u32 2, %s19
        %p240 = scmp.lt.s32.totalorder %s239, 3
        %s241 = scalar_select %p240, %s239, 3
        %s242 = scalar_lea.vmem %s0, %s241
        %p243 = pneg %p40
        %p244 = pneg %p37
        %s245 = smul.u32 2, %s19
        %p246 = scmp.lt.s32.totalorder %s245, 3
        %s247 = scalar_select %p246, %s245, 3
        %s248 = scalar_lea.vmem %s1, %s247
        %p249 = pneg %p66
        %p250 = pneg %p63
        %s251 = smul.u32 2, %s19
        %p252 = scmp.lt.s32.totalorder %s251, 3
        %s253 = scalar_select %p252, %s251, 3
        %s254 = scalar_lea.vmem %s2, %s253
        %p255 = pneg %p92
        %p256 = pneg %p89
        %p257 = pneg %p113
        %p258 = pneg %p110
        %p259 = pneg %p134
        %p260 = pneg %p131
        %p261 = pneg %p155
        %p262 = pneg %p152
        %s263 = smul.u32 2, %s19
        %p264 = scmp.lt.s32.totalorder %s263, 3
        %s265 = scalar_select %p264, %s263, 3
        %s266 = scalar_lea.vmem %s0, %s265
        %s267 = smul.u32 2, %s19
        %s268 = smul.u32 2, %s19
        %p269 = scmp.lt.s32.totalorder %s268, 3
        %s270 = scalar_select %p269, %s268, 3
        %s271 = scalar_lea.vmem %s1, %s270
        %s272 = smul.u32 2, %s19
        %s273 = smul.u32 2, %s19
        %p274 = scmp.lt.s32.totalorder %s273, 3
        %s275 = scalar_select %p274, %s273, 3
        %s276 = scalar_lea.vmem %s2, %s275
        %s277 = smul.u32 2, %s19
        %p278 = scmp.eq.s32.totalorder %s19, 0
        // Predicated region
        $region49: #{glove_loss_step.1} parent=39 // pred_check
          %p279 = pneg %p278
        $region50: #{glove_loss_step.1} parent=39 // pred_check_branch
          %281 = sbr.rel (%p279) target = $region52
        $region51: #{glove_loss_step.1} parent=39 // pred_region
          %vm282 = vcmask 7168
          %283 = vst.msk [vmem:[#allocation2] sm:$0xff] %vm282, 0.0
        $region52: #{glove_loss_step.1} parent=39 // pred_fallthru
          _
        %v284 = vld [vmem:[%s266] sm:$0x3]
        %v285 = vld [vmem:[%s271] sm:$0x3]
        %v286 = vld [vmem:[%s276] sm:$0x3]
        %v287 = vlaneseq
        %v288 = vshrl.u32 %v287, 7
        %v289 = vadd.s32 %v288, 8
        %v290 = vadd.s32 %v288, 16
        %v291 = vadd.s32 %v288, 24
        %v292 = vadd.s32 %v288, 32
        %v293 = vadd.s32 %v288, 40
        %v294 = vadd.s32 %v288, 48
        %v295 = vadd.s32 %v288, 56
        %v296 = vadd.s32 %v288, 64
        %v297 = vadd.s32 %v288, 72
        %v298 = vadd.s32 %v288, 80
        %v299 = vadd.s32 %v288, 88
        %v300 = vadd.s32 %v288, 96
        %v301 = vadd.s32 %v288, 104
        %v302 = vadd.s32 %v288, 112
        %v303 = vadd.s32 %v288, 120
        %v304 = vadd.s32 %v288, 128
        %v305 = vadd.s32 %v288, 136
        %v306 = vadd.s32 %v288, 144
        %v307 = vadd.s32 %v288, 152
        %v308 = vadd.s32 %v288, 160
        %v309 = vadd.s32 %v288, 168
        %v310 = vadd.s32 %v288, 176
        %v311 = vadd.s32 %v288, 184
        %v312 = vadd.s32 %v288, 192
        %v313 = vadd.s32 %v288, 200
        %v314 = vadd.s32 %v288, 208
        %v315 = vadd.s32 %v288, 216
        %v316 = vadd.s32 %v288, 224
        %v317 = vadd.s32 %v288, 232
        %v318 = vadd.s32 %v288, 240
        %v319 = vadd.s32 %v288, 248
        %v320 = vlaneseq
        %v321 = vshrl.u32 %v320, 7
        %v322 = vsub.s32 0, %v321
        %v323 = vrot.slane %v284, %v322
        %v324 = vlaneseq
        %v325 = vshrl.u32 %v324, 7
        %v326 = vsub.s32 1, %v325
        %v327 = vrot.slane %v284, %v326
        %vm328 = vcmp.eq.s32.totalorder %v288, %v323
        %vm329 = vcmp.eq.s32.totalorder %v288, %v327
        %vm330 = vcmp.eq.s32.totalorder %v289, %v323
        %vm331 = vcmp.eq.s32.totalorder %v289, %v327
        %vm332 = vcmp.eq.s32.totalorder %v290, %v323
        %vm333 = vcmp.eq.s32.totalorder %v290, %v327
        %vm334 = vcmp.eq.s32.totalorder %v291, %v323
        %vm335 = vcmp.eq.s32.totalorder %v291, %v327
        %vm336 = vcmp.eq.s32.totalorder %v292, %v323
        %vm337 = vcmp.eq.s32.totalorder %v292, %v327
        %vm338 = vcmp.eq.s32.totalorder %v293, %v323
        %vm339 = vcmp.eq.s32.totalorder %v293, %v327
        %vm340 = vcmp.eq.s32.totalorder %v294, %v323
        %vm341 = vcmp.eq.s32.totalorder %v294, %v327
        %vm342 = vcmp.eq.s32.totalorder %v295, %v323
        %vm343 = vcmp.eq.s32.totalorder %v295, %v327
        %vm344 = vcmp.eq.s32.totalorder %v296, %v323
        %vm345 = vcmp.eq.s32.totalorder %v296, %v327
        %vm346 = vcmp.eq.s32.totalorder %v297, %v323
        %vm347 = vcmp.eq.s32.totalorder %v297, %v327
        %vm348 = vcmp.eq.s32.totalorder %v298, %v323
        %vm349 = vcmp.eq.s32.totalorder %v298, %v327
        %vm350 = vcmp.eq.s32.totalorder %v299, %v323
        %vm351 = vcmp.eq.s32.totalorder %v299, %v327
        %vm352 = vcmp.eq.s32.totalorder %v300, %v323
        %vm353 = vcmp.eq.s32.totalorder %v300, %v327
        %vm354 = vcmp.eq.s32.totalorder %v301, %v323
        %vm355 = vcmp.eq.s32.totalorder %v301, %v327
        %vm356 = vcmp.eq.s32.totalorder %v302, %v323
        %vm357 = vcmp.eq.s32.totalorder %v302, %v327
        %vm358 = vcmp.eq.s32.totalorder %v303, %v323
        %vm359 = vcmp.eq.s32.totalorder %v303, %v327
        %vm360 = vcmp.eq.s32.totalorder %v304, %v323
        %vm361 = vcmp.eq.s32.totalorder %v304, %v327
        %vm362 = vcmp.eq.s32.totalorder %v305, %v323
        %vm363 = vcmp.eq.s32.totalorder %v305, %v327
        %vm364 = vcmp.eq.s32.totalorder %v306, %v323
        %vm365 = vcmp.eq.s32.totalorder %v306, %v327
        %vm366 = vcmp.eq.s32.totalorder %v307, %v323
        %vm367 = vcmp.eq.s32.totalorder %v307, %v327
        %vm368 = vcmp.eq.s32.totalorder %v308, %v323
        %vm369 = vcmp.eq.s32.totalorder %v308, %v327
        %vm370 = vcmp.eq.s32.totalorder %v309, %v323
        %vm371 = vcmp.eq.s32.totalorder %v309, %v327
        %vm372 = vcmp.eq.s32.totalorder %v310, %v323
        %vm373 = vcmp.eq.s32.totalorder %v310, %v327
        %vm374 = vcmp.eq.s32.totalorder %v311, %v323
        %vm375 = vcmp.eq.s32.totalorder %v311, %v327
        %vm376 = vcmp.eq.s32.totalorder %v312, %v323
        %vm377 = vcmp.eq.s32.totalorder %v312, %v327
        %vm378 = vcmp.eq.s32.totalorder %v313, %v323
        %vm379 = vcmp.eq.s32.totalorder %v313, %v327
        %vm380 = vcmp.eq.s32.totalorder %v314, %v323
        %vm381 = vcmp.eq.s32.totalorder %v314, %v327
        %vm382 = vcmp.eq.s32.totalorder %v315, %v323
        %vm383 = vcmp.eq.s32.totalorder %v315, %v327
        %vm384 = vcmp.eq.s32.totalorder %v316, %v323
        %vm385 = vcmp.eq.s32.totalorder %v316, %v327
        %vm386 = vcmp.eq.s32.totalorder %v317, %v323
        %vm387 = vcmp.eq.s32.totalorder %v317, %v327
        %vm388 = vcmp.eq.s32.totalorder %v318, %v323
        %vm389 = vcmp.eq.s32.totalorder %v318, %v327
        %vm390 = vcmp.eq.s32.totalorder %v319, %v323
        %vm391 = vcmp.eq.s32.totalorder %v319, %v327
        %v392 = vsel %vm328, 1, 0
        %v393 = vsel %vm329, 1, 0
        %v394 = vsel %vm330, 1, 0
        %v395 = vsel %vm331, 1, 0
        %v396 = vsel %vm332, 1, 0
        %v397 = vsel %vm333, 1, 0
        %v398 = vsel %vm334, 1, 0
        %v399 = vsel %vm335, 1, 0
        %v400 = vsel %vm336, 1, 0
        %v401 = vsel %vm337, 1, 0
        %v402 = vsel %vm338, 1, 0
        %v403 = vsel %vm339, 1, 0
        %v404 = vsel %vm340, 1, 0
        %v405 = vsel %vm341, 1, 0
        %v406 = vsel %vm342, 1, 0
        %v407 = vsel %vm343, 1, 0
        %v408 = vsel %vm344, 1, 0
        %v409 = vsel %vm345, 1, 0
        %v410 = vsel %vm346, 1, 0
        %v411 = vsel %vm347, 1, 0
        %v412 = vsel %vm348, 1, 0
        %v413 = vsel %vm349, 1, 0
        %v414 = vsel %vm350, 1, 0
        %v415 = vsel %vm351, 1, 0
        %v416 = vsel %vm352, 1, 0
        %v417 = vsel %vm353, 1, 0
        %v418 = vsel %vm354, 1, 0
        %v419 = vsel %vm355, 1, 0
        %v420 = vsel %vm356, 1, 0
        %v421 = vsel %vm357, 1, 0
        %v422 = vsel %vm358, 1, 0
        %v423 = vsel %vm359, 1, 0
        %v424 = vsel %vm360, 1, 0
        %v425 = vsel %vm361, 1, 0
        %v426 = vsel %vm362, 1, 0
        %v427 = vsel %vm363, 1, 0
        %v428 = vsel %vm364, 1, 0
        %v429 = vsel %vm365, 1, 0
        %v430 = vsel %vm366, 1, 0
        %v431 = vsel %vm367, 1, 0
        %v432 = vsel %vm368, 1, 0
        %v433 = vsel %vm369, 1, 0
        %v434 = vsel %vm370, 1, 0
        %v435 = vsel %vm371, 1, 0
        %v436 = vsel %vm372, 1, 0
        %v437 = vsel %vm373, 1, 0
        %v438 = vsel %vm374, 1, 0
        %v439 = vsel %vm375, 1, 0
        %v440 = vsel %vm376, 1, 0
        %v441 = vsel %vm377, 1, 0
        %v442 = vsel %vm378, 1, 0
        %v443 = vsel %vm379, 1, 0
        %v444 = vsel %vm380, 1, 0
        %v445 = vsel %vm381, 1, 0
        %v446 = vsel %vm382, 1, 0
        %v447 = vsel %vm383, 1, 0
        %v448 = vsel %vm384, 1, 0
        %v449 = vsel %vm385, 1, 0
        %v450 = vsel %vm386, 1, 0
        %v451 = vsel %vm387, 1, 0
        %v452 = vsel %vm388, 1, 0
        %v453 = vsel %vm389, 1, 0
        %v454 = vsel %vm390, 1, 0
        %v455 = vsel %vm391, 1, 0
        %v456 = vcvt.s32.f32 %v392
        %v457 = vcvt.s32.f32 %v393
        %v458 = vcvt.s32.f32 %v394
        %v459 = vcvt.s32.f32 %v395
        %v460 = vcvt.s32.f32 %v396
        %v461 = vcvt.s32.f32 %v397
        %v462 = vcvt.s32.f32 %v398
        %v463 = vcvt.s32.f32 %v399
        %v464 = vcvt.s32.f32 %v400
        %v465 = vcvt.s32.f32 %v401
        %v466 = vcvt.s32.f32 %v402
        %v467 = vcvt.s32.f32 %v403
        %v468 = vcvt.s32.f32 %v404
        %v469 = vcvt.s32.f32 %v405
        %v470 = vcvt.s32.f32 %v406
        %v471 = vcvt.s32.f32 %v407
        %v472 = vcvt.s32.f32 %v408
        %v473 = vcvt.s32.f32 %v409
        %v474 = vcvt.s32.f32 %v410
        %v475 = vcvt.s32.f32 %v411
        %v476 = vcvt.s32.f32 %v412
        %v477 = vcvt.s32.f32 %v413
        %v478 = vcvt.s32.f32 %v414
        %v479 = vcvt.s32.f32 %v415
        %v480 = vcvt.s32.f32 %v416
        %v481 = vcvt.s32.f32 %v417
        %v482 = vcvt.s32.f32 %v418
        %v483 = vcvt.s32.f32 %v419
        %v484 = vcvt.s32.f32 %v420
        %v485 = vcvt.s32.f32 %v421
        %v486 = vcvt.s32.f32 %v422
        %v487 = vcvt.s32.f32 %v423
        %v488 = vcvt.s32.f32 %v424
        %v489 = vcvt.s32.f32 %v425
        %v490 = vcvt.s32.f32 %v426
        %v491 = vcvt.s32.f32 %v427
        %v492 = vcvt.s32.f32 %v428
        %v493 = vcvt.s32.f32 %v429
        %v494 = vcvt.s32.f32 %v430
        %v495 = vcvt.s32.f32 %v431
        %v496 = vcvt.s32.f32 %v432
        %v497 = vcvt.s32.f32 %v433
        %v498 = vcvt.s32.f32 %v434
        %v499 = vcvt.s32.f32 %v435
        %v500 = vcvt.s32.f32 %v436
        %v501 = vcvt.s32.f32 %v437
        %v502 = vcvt.s32.f32 %v438
        %v503 = vcvt.s32.f32 %v439
        %v504 = vcvt.s32.f32 %v440
        %v505 = vcvt.s32.f32 %v441
        %v506 = vcvt.s32.f32 %v442
        %v507 = vcvt.s32.f32 %v443
        %v508 = vcvt.s32.f32 %v444
        %v509 = vcvt.s32.f32 %v445
        %v510 = vcvt.s32.f32 %v446
        %v511 = vcvt.s32.f32 %v447
        %v512 = vcvt.s32.f32 %v448
        %v513 = vcvt.s32.f32 %v449
        %v514 = vcvt.s32.f32 %v450
        %v515 = vcvt.s32.f32 %v451
        %v516 = vcvt.s32.f32 %v452
        %v517 = vcvt.s32.f32 %v453
        %v518 = vcvt.s32.f32 %v454
        %v519 = vcvt.s32.f32 %v455
        %v520 = vld [vmem:[#allocation3] sm:$0xff]
        %v521 = vld [vmem:[#allocation3 + $0x8] sm:$0xff]
        %v522 = vld [vmem:[#allocation3 + $0x10] sm:$0xff]
        %v523 = vld [vmem:[#allocation3 + $0x18] sm:$0xff]
        %v524 = vld [vmem:[#allocation3 + $0x20] sm:$0xff]
        %v525 = vld [vmem:[#allocation3 + $0x28] sm:$0xff]
        %v526 = vld [vmem:[#allocation3 + $0x30] sm:$0xff]
        %v527 = vld [vmem:[#allocation3 + $0x38] sm:$0xff]
        %v528 = vld [vmem:[#allocation3 + $0x40] sm:$0x1]
        %v529 = vld [vmem:[#allocation3 + $0x48] sm:$0x1]
        %530 = vmatprep.subr.mxu0 %v457
        %531 = vmatpush1.msra.mxu0 %v456
        %532 = vmatprep.subr.mxu0 %v459
        %533 = vmatpush1.msra.mxu0 %v458
        %534 = vmatprep.subr.mxu0 %v461
        %535 = vmatpush1.msra.mxu0 %v460
        %536 = vmatprep.subr.mxu0 %v463
        %537 = vmatpush1.msra.mxu0 %v462
        %538 = vmatprep.subr.mxu0 %v465
        %539 = vmatpush1.msra.mxu0 %v464
        %540 = vmatprep.subr.mxu0 %v467
        %541 = vmatpush1.msra.mxu0 %v466
        %542 = vmatprep.subr.mxu0 %v469
        %543 = vmatpush1.msra.mxu0 %v468
        %544 = vmatprep.subr.mxu0 %v471
        %545 = vmatpush1.msra.mxu0 %v470
        %546 = vmatprep.subr.mxu0 %v473
        %547 = vmatpush1.msra.mxu0 %v472
        %548 = vmatprep.subr.mxu0 %v475
        %549 = vmatpush1.msra.mxu0 %v474
        %550 = vmatprep.subr.mxu0 %v477
        %551 = vmatpush1.msra.mxu0 %v476
        %552 = vmatprep.subr.mxu0 %v479
        %553 = vmatpush1.msra.mxu0 %v478
        %554 = vmatprep.subr.mxu0 %v481
        %555 = vmatpush1.msra.mxu0 %v480
        %556 = vmatprep.subr.mxu0 %v483
        %557 = vmatpush1.msra.mxu0 %v482
        %558 = vmatprep.subr.mxu0 %v485
        %559 = vmatpush1.msra.mxu0 %v484
        %560 = vmatprep.subr.mxu0 %v487
        %561 = vmatpush1.msra.mxu0 %v486
        %562 = vmatprep.subr.mxu0 %v489
        %563 = vmatpush1.msra.mxu0 %v488
        %564 = vmatprep.subr.mxu0 %v491
        %565 = vmatpush1.msra.mxu0 %v490
        %566 = vmatprep.subr.mxu0 %v493
        %567 = vmatpush1.msra.mxu0 %v492
        %568 = vmatprep.subr.mxu0 %v495
        %569 = vmatpush1.msra.mxu0 %v494
        %570 = vmatprep.subr.mxu0 %v497
        %571 = vmatpush1.msra.mxu0 %v496
        %572 = vmatprep.subr.mxu0 %v499
        %573 = vmatpush1.msra.mxu0 %v498
        %574 = vmatprep.subr.mxu0 %v501
        %575 = vmatpush1.msra.mxu0 %v500
        %576 = vmatprep.subr.mxu0 %v503
        %577 = vmatpush1.msra.mxu0 %v502
        %578 = vmatprep.subr.mxu0 %v505
        %579 = vmatpush1.msra.mxu0 %v504
        %580 = vmatprep.subr.mxu0 %v507
        %581 = vmatpush1.msra.mxu0 %v506
        %582 = vmatprep.subr.mxu0 %v509
        %583 = vmatpush1.msra.mxu0 %v508
        %584 = vmatprep.subr.mxu0 %v511
        %585 = vmatpush1.msra.mxu0 %v510
        %586 = vmatprep.subr.mxu0 %v513
        %587 = vmatpush1.msra.mxu0 %v512
        %588 = vmatprep.subr.mxu0 %v515
        %589 = vmatpush1.msra.mxu0 %v514
        %590 = vmatprep.subr.mxu0 %v517
        %591 = vmatpush1.msra.mxu0 %v516
        %592 = vmatprep.subr.mxu0 %v519
        %593 = vmatpush1.msra.mxu0 %v518
        %594 = vmatprep.mubr.f32.mxu0 %v521
        %595 = vmatmul.mubr.f32.gmra.mrb[0].mxu0 %v520
        %v596 = vpop.f32.mrb[0].mxu0
        %v597 = vadd.f32 0.0, %v596
        %v598 = vpop.f32.mrb[0].mxu0
        %v599 = vadd.f32 0.0, %v598
        %600 = vmatprep.mubr.f32.mxu0 %v523
        %601 = vmatmul.mubr.f32.gmra.mrb[0].mxu0 %v522
        %v602 = vpop.f32.mrb[0].mxu0
        %v603 = vadd.f32 0.0, %v602
        %v604 = vpop.f32.mrb[0].mxu0
        %v605 = vadd.f32 0.0, %v604
        %606 = vmatprep.mubr.f32.mxu0 %v525
        %607 = vmatmul.mubr.f32.gmra.mrb[0].mxu0 %v524
        %v608 = vpop.f32.mrb[0].mxu0
        %v609 = vadd.f32 0.0, %v608
        %v610 = vpop.f32.mrb[0].mxu0
        %v611 = vadd.f32 0.0, %v610
        %612 = vmatprep.mubr.f32.mxu0 %v527
        %613 = vmatmul.mubr.f32.gmra.mrb[0].mxu0 %v526
        %v614 = vpop.f32.mrb[0].mxu0
        %v615 = vadd.f32 0.0, %v614
        %v616 = vpop.f32.mrb[0].mxu0
        %v617 = vadd.f32 0.0, %v616
        %618 = vmatprep.mubr.f32.mxu0 %v529
        %619 = vmatmul.mubr.f32.gmra.mrb[0].mxu0 %v528
        %v620 = vpop.f32.mrb[0].mxu0
        %v621 = vadd.f32 0.0, %v620
        %v622 = vpop.f32.mrb[0].mxu0
        %v623 = vadd.f32 0.0, %v622
        %624 = vdwg.mxu0
        %v625 = vlaneseq
        %v626 = vshrl.u32 %v625, 7
        %v627 = vsub.s32 0, %v626
        %v628 = vrot.slane %v285, %v627
        %v629 = vlaneseq
        %v630 = vshrl.u32 %v629, 7
        %v631 = vsub.s32 1, %v630
        %v632 = vrot.slane %v285, %v631
        %vm633 = vcmp.eq.s32.totalorder %v288, %v628
        %vm634 = vcmp.eq.s32.totalorder %v288, %v632
        %vm635 = vcmp.eq.s32.totalorder %v289, %v628
        %vm636 = vcmp.eq.s32.totalorder %v289, %v632
        %vm637 = vcmp.eq.s32.totalorder %v290, %v628
        %vm638 = vcmp.eq.s32.totalorder %v290, %v632
        %vm639 = vcmp.eq.s32.totalorder %v291, %v628
        %vm640 = vcmp.eq.s32.totalorder %v291, %v632
        %vm641 = vcmp.eq.s32.totalorder %v292, %v628
        %vm642 = vcmp.eq.s32.totalorder %v292, %v632
        %vm643 = vcmp.eq.s32.totalorder %v293, %v628
        %vm644 = vcmp.eq.s32.totalorder %v293, %v632
        %vm645 = vcmp.eq.s32.totalorder %v294, %v628
        %vm646 = vcmp.eq.s32.totalorder %v294, %v632
        %vm647 = vcmp.eq.s32.totalorder %v295, %v628
        %vm648 = vcmp.eq.s32.totalorder %v295, %v632
        %vm649 = vcmp.eq.s32.totalorder %v296, %v628
        %vm650 = vcmp.eq.s32.totalorder %v296, %v632
        %vm651 = vcmp.eq.s32.totalorder %v297, %v628
        %vm652 = vcmp.eq.s32.totalorder %v297, %v632
        %vm653 = vcmp.eq.s32.totalorder %v298, %v628
        %vm654 = vcmp.eq.s32.totalorder %v298, %v632
        %vm655 = vcmp.eq.s32.totalorder %v299, %v628
        %vm656 = vcmp.eq.s32.totalorder %v299, %v632
        %vm657 = vcmp.eq.s32.totalorder %v300, %v628
        %vm658 = vcmp.eq.s32.totalorder %v300, %v632
        %vm659 = vcmp.eq.s32.totalorder %v301, %v628
        %vm660 = vcmp.eq.s32.totalorder %v301, %v632
        %vm661 = vcmp.eq.s32.totalorder %v302, %v628
        %vm662 = vcmp.eq.s32.totalorder %v302, %v632
        %vm663 = vcmp.eq.s32.totalorder %v303, %v628
        %vm664 = vcmp.eq.s32.totalorder %v303, %v632
        %vm665 = vcmp.eq.s32.totalorder %v304, %v628
        %vm666 = vcmp.eq.s32.totalorder %v304, %v632
        %vm667 = vcmp.eq.s32.totalorder %v305, %v628
        %vm668 = vcmp.eq.s32.totalorder %v305, %v632
        %vm669 = vcmp.eq.s32.totalorder %v306, %v628
        %vm670 = vcmp.eq.s32.totalorder %v306, %v632
        %vm671 = vcmp.eq.s32.totalorder %v307, %v628
        %vm672 = vcmp.eq.s32.totalorder %v307, %v632
        %vm673 = vcmp.eq.s32.totalorder %v308, %v628
        %vm674 = vcmp.eq.s32.totalorder %v308, %v632
        %vm675 = vcmp.eq.s32.totalorder %v309, %v628
        %vm676 = vcmp.eq.s32.totalorder %v309, %v632
        %vm677 = vcmp.eq.s32.totalorder %v310, %v628
        %vm678 = vcmp.eq.s32.totalorder %v310, %v632
        %vm679 = vcmp.eq.s32.totalorder %v311, %v628
        %vm680 = vcmp.eq.s32.totalorder %v311, %v632
        %vm681 = vcmp.eq.s32.totalorder %v312, %v628
        %vm682 = vcmp.eq.s32.totalorder %v312, %v632
        %vm683 = vcmp.eq.s32.totalorder %v313, %v628
        %vm684 = vcmp.eq.s32.totalorder %v313, %v632
        %vm685 = vcmp.eq.s32.totalorder %v314, %v628
        %vm686 = vcmp.eq.s32.totalorder %v314, %v632
        %vm687 = vcmp.eq.s32.totalorder %v315, %v628
        %vm688 = vcmp.eq.s32.totalorder %v315, %v632
        %vm689 = vcmp.eq.s32.totalorder %v316, %v628
        %vm690 = vcmp.eq.s32.totalorder %v316, %v632
        %vm691 = vcmp.eq.s32.totalorder %v317, %v628
        %vm692 = vcmp.eq.s32.totalorder %v317, %v632
        %vm693 = vcmp.eq.s32.totalorder %v318, %v628
        %vm694 = vcmp.eq.s32.totalorder %v318, %v632
        %vm695 = vcmp.eq.s32.totalorder %v319, %v628
        %vm696 = vcmp.eq.s32.totalorder %v319, %v632
        %v697 = vsel %vm633, 1, 0
        %v698 = vsel %vm634, 1, 0
        %v699 = vsel %vm635, 1, 0
        %v700 = vsel %vm636, 1, 0
        %v701 = vsel %vm637, 1, 0
        %v702 = vsel %vm638, 1, 0
        %v703 = vsel %vm639, 1, 0
        %v704 = vsel %vm640, 1, 0
        %v705 = vsel %vm641, 1, 0
        %v706 = vsel %vm642, 1, 0
        %v707 = vsel %vm643, 1, 0
        %v708 = vsel %vm644, 1, 0
        %v709 = vsel %vm645, 1, 0
        %v710 = vsel %vm646, 1, 0
        %v711 = vsel %vm647, 1, 0
        %v712 = vsel %vm648, 1, 0
        %v713 = vsel %vm649, 1, 0
        %v714 = vsel %vm650, 1, 0
        %v715 = vsel %vm651, 1, 0
        %v716 = vsel %vm652, 1, 0
        %v717 = vsel %vm653, 1, 0
        %v718 = vsel %vm654, 1, 0
        %v719 = vsel %vm655, 1, 0
        %v720 = vsel %vm656, 1, 0
        %v721 = vsel %vm657, 1, 0
        %v722 = vsel %vm658, 1, 0
        %v723 = vsel %vm659, 1, 0
        %v724 = vsel %vm660, 1, 0
        %v725 = vsel %vm661, 1, 0
        %v726 = vsel %vm662, 1, 0
        %v727 = vsel %vm663, 1, 0
        %v728 = vsel %vm664, 1, 0
        %v729 = vsel %vm665, 1, 0
        %v730 = vsel %vm666, 1, 0
        %v731 = vsel %vm667, 1, 0
        %v732 = vsel %vm668, 1, 0
        %v733 = vsel %vm669, 1, 0
        %v734 = vsel %vm670, 1, 0
        %v735 = vsel %vm671, 1, 0
        %v736 = vsel %vm672, 1, 0
        %v737 = vsel %vm673, 1, 0
        %v738 = vsel %vm674, 1, 0
        %v739 = vsel %vm675, 1, 0
        %v740 = vsel %vm676, 1, 0
        %v741 = vsel %vm677, 1, 0
        %v742 = vsel %vm678, 1, 0
        %v743 = vsel %vm679, 1, 0
        %v744 = vsel %vm680, 1, 0
        %v745 = vsel %vm681, 1, 0
        %v746 = vsel %vm682, 1, 0
        %v747 = vsel %vm683, 1, 0
        %v748 = vsel %vm684, 1, 0
        %v749 = vsel %vm685, 1, 0
        %v750 = vsel %vm686, 1, 0
        %v751 = vsel %vm687, 1, 0
        %v752 = vsel %vm688, 1, 0
        %v753 = vsel %vm689, 1, 0
        %v754 = vsel %vm690, 1, 0
        %v755 = vsel %vm691, 1, 0
        %v756 = vsel %vm692, 1, 0
        %v757 = vsel %vm693, 1, 0
        %v758 = vsel %vm694, 1, 0
        %v759 = vsel %vm695, 1, 0
        %v760 = vsel %vm696, 1, 0
        %v761 = vcvt.s32.f32 %v697
        %v762 = vcvt.s32.f32 %v698
        %v763 = vcvt.s32.f32 %v699
        %v764 = vcvt.s32.f32 %v700
        %v765 = vcvt.s32.f32 %v701
        %v766 = vcvt.s32.f32 %v702
        %v767 = vcvt.s32.f32 %v703
        %v768 = vcvt.s32.f32 %v704
        %v769 = vcvt.s32.f32 %v705
        %v770 = vcvt.s32.f32 %v706
        %v771 = vcvt.s32.f32 %v707
        %v772 = vcvt.s32.f32 %v708
        %v773 = vcvt.s32.f32 %v709
        %v774 = vcvt.s32.f32 %v710
        %v775 = vcvt.s32.f32 %v711
        %v776 = vcvt.s32.f32 %v712
        %v777 = vcvt.s32.f32 %v713
        %v778 = vcvt.s32.f32 %v714
        %v779 = vcvt.s32.f32 %v715
        %v780 = vcvt.s32.f32 %v716
        %v781 = vcvt.s32.f32 %v717
        %v782 = vcvt.s32.f32 %v718
        %v783 = vcvt.s32.f32 %v719
        %v784 = vcvt.s32.f32 %v720
        %v785 = vcvt.s32.f32 %v721
        %v786 = vcvt.s32.f32 %v722
        %v787 = vcvt.s32.f32 %v723
        %v788 = vcvt.s32.f32 %v724
        %v789 = vcvt.s32.f32 %v725
        %v790 = vcvt.s32.f32 %v726
        %v791 = vcvt.s32.f32 %v727
        %v792 = vcvt.s32.f32 %v728
        %v793 = vcvt.s32.f32 %v729
        %v794 = vcvt.s32.f32 %v730
        %v795 = vcvt.s32.f32 %v731
        %v796 = vcvt.s32.f32 %v732
        %v797 = vcvt.s32.f32 %v733
        %v798 = vcvt.s32.f32 %v734
        %v799 = vcvt.s32.f32 %v735
        %v800 = vcvt.s32.f32 %v736
        %v801 = vcvt.s32.f32 %v737
        %v802 = vcvt.s32.f32 %v738
        %v803 = vcvt.s32.f32 %v739
        %v804 = vcvt.s32.f32 %v740
        %v805 = vcvt.s32.f32 %v741
        %v806 = vcvt.s32.f32 %v742
        %v807 = vcvt.s32.f32 %v743
        %v808 = vcvt.s32.f32 %v744
        %v809 = vcvt.s32.f32 %v745
        %v810 = vcvt.s32.f32 %v746
        %v811 = vcvt.s32.f32 %v747
        %v812 = vcvt.s32.f32 %v748
        %v813 = vcvt.s32.f32 %v749
        %v814 = vcvt.s32.f32 %v750
        %v815 = vcvt.s32.f32 %v751
        %v816 = vcvt.s32.f32 %v752
        %v817 = vcvt.s32.f32 %v753
        %v818 = vcvt.s32.f32 %v754
        %v819 = vcvt.s32.f32 %v755
        %v820 = vcvt.s32.f32 %v756
        %v821 = vcvt.s32.f32 %v757
        %v822 = vcvt.s32.f32 %v758
        %v823 = vcvt.s32.f32 %v759
        %v824 = vcvt.s32.f32 %v760
        %v825 = vld [vmem:[#allocation6] sm:$0xff]
        %v826 = vld [vmem:[#allocation6 + $0x8] sm:$0xff]
        %v827 = vld [vmem:[#allocation6 + $0x10] sm:$0xff]
        %v828 = vld [vmem:[#allocation6 + $0x18] sm:$0xff]
        %v829 = vld [vmem:[#allocation6 + $0x20] sm:$0xff]
        %v830 = vld [vmem:[#allocation6 + $0x28] sm:$0xff]
        %v831 = vld [vmem:[#allocation6 + $0x30] sm:$0xff]
        %v832 = vld [vmem:[#allocation6 + $0x38] sm:$0xff]
        %v833 = vld [vmem:[#allocation6 + $0x40] sm:$0x1]
        %v834 = vld [vmem:[#allocation6 + $0x48] sm:$0x1]
        %835 = vmatprep.subr.mxu0 %v762
        %836 = vmatpush1.msra.mxu0 %v761
        %837 = vmatprep.subr.mxu0 %v764
        %838 = vmatpush1.msra.mxu0 %v763
        %839 = vmatprep.subr.mxu0 %v766
        %840 = vmatpush1.msra.mxu0 %v765
        %841 = vmatprep.subr.mxu0 %v768
        %842 = vmatpush1.msra.mxu0 %v767
        %843 = vmatprep.subr.mxu0 %v770
        %844 = vmatpush1.msra.mxu0 %v769
        %845 = vmatprep.subr.mxu0 %v772
        %846 = vmatpush1.msra.mxu0 %v771
        %847 = vmatprep.subr.mxu0 %v774
        %848 = vmatpush1.msra.mxu0 %v773
        %849 = vmatprep.subr.mxu0 %v776
        %850 = vmatpush1.msra.mxu0 %v775
        %851 = vmatprep.subr.mxu0 %v778
        %852 = vmatpush1.msra.mxu0 %v777
        %853 = vmatprep.subr.mxu0 %v780
        %854 = vmatpush1.msra.mxu0 %v779
        %855 = vmatprep.subr.mxu0 %v782
        %856 = vmatpush1.msra.mxu0 %v781
        %857 = vmatprep.subr.mxu0 %v784
        %858 = vmatpush1.msra.mxu0 %v783
        %859 = vmatprep.subr.mxu0 %v786
        %860 = vmatpush1.msra.mxu0 %v785
        %861 = vmatprep.subr.mxu0 %v788
        %862 = vmatpush1.msra.mxu0 %v787
        %863 = vmatprep.subr.mxu0 %v790
        %864 = vmatpush1.msra.mxu0 %v789
        %865 = vmatprep.subr.mxu0 %v792
        %866 = vmatpush1.msra.mxu0 %v791
        %867 = vmatprep.subr.mxu0 %v794
        %868 = vmatpush1.msra.mxu0 %v793
        %869 = vmatprep.subr.mxu0 %v796
        %870 = vmatpush1.msra.mxu0 %v795
        %871 = vmatprep.subr.mxu0 %v798
        %872 = vmatpush1.msra.mxu0 %v797
        %873 = vmatprep.subr.mxu0 %v800
        %874 = vmatpush1.msra.mxu0 %v799
        %875 = vmatprep.subr.mxu0 %v802
        %876 = vmatpush1.msra.mxu0 %v801
        %877 = vmatprep.subr.mxu0 %v804
        %878 = vmatpush1.msra.mxu0 %v803
        %879 = vmatprep.subr.mxu0 %v806
        %880 = vmatpush1.msra.mxu0 %v805
        %881 = vmatprep.subr.mxu0 %v808
        %882 = vmatpush1.msra.mxu0 %v807
        %883 = vmatprep.subr.mxu0 %v810
        %884 = vmatpush1.msra.mxu0 %v809
        %885 = vmatprep.subr.mxu0 %v812
        %886 = vmatpush1.msra.mxu0 %v811
        %887 = vmatprep.subr.mxu0 %v814
        %888 = vmatpush1.msra.mxu0 %v813
        %889 = vmatprep.subr.mxu0 %v816
        %890 = vmatpush1.msra.mxu0 %v815
        %891 = vmatprep.subr.mxu0 %v818
        %892 = vmatpush1.msra.mxu0 %v817
        %893 = vmatprep.subr.mxu0 %v820
        %894 = vmatpush1.msra.mxu0 %v819
        %895 = vmatprep.subr.mxu0 %v822
        %896 = vmatpush1.msra.mxu0 %v821
        %897 = vmatprep.subr.mxu0 %v824
        %898 = vmatpush1.msra.mxu0 %v823
        %899 = vmatprep.mubr.f32.mxu0 %v826
        %900 = vmatmul.mubr.f32.gmra.mrb[0].mxu0 %v825
        %v901 = vpop.f32.mrb[0].mxu0
        %v902 = vadd.f32 0.0, %v901
        %v903 = vpop.f32.mrb[0].mxu0
        %v904 = vadd.f32 0.0, %v903
        %905 = vmatprep.mubr.f32.mxu0 %v828
        %906 = vmatmul.mubr.f32.gmra.mrb[0].mxu0 %v827
        %v907 = vpop.f32.mrb[0].mxu0
        %v908 = vadd.f32 0.0, %v907
        %v909 = vpop.f32.mrb[0].mxu0
        %v910 = vadd.f32 0.0, %v909
        %911 = vmatprep.mubr.f32.mxu0 %v830
        %912 = vmatmul.mubr.f32.gmra.mrb[0].mxu0 %v829
        %v913 = vpop.f32.mrb[0].mxu0
        %v914 = vadd.f32 0.0, %v913
        %v915 = vpop.f32.mrb[0].mxu0
        %v916 = vadd.f32 0.0, %v915
        %917 = vmatprep.mubr.f32.mxu0 %v832
        %918 = vmatmul.mubr.f32.gmra.mrb[0].mxu0 %v831
        %v919 = vpop.f32.mrb[0].mxu0
        %v920 = vadd.f32 0.0, %v919
        %v921 = vpop.f32.mrb[0].mxu0
        %v922 = vadd.f32 0.0, %v921
        %923 = vmatprep.mubr.f32.mxu0 %v834
        %924 = vmatmul.mubr.f32.gmra.mrb[0].mxu0 %v833
        %v925 = vpop.f32.mrb[0].mxu0
        %v926 = vadd.f32 0.0, %v925
        %v927 = vpop.f32.mrb[0].mxu0
        %v928 = vadd.f32 0.0, %v927
        %929 = vdwg.mxu0
        %v930 = vmul.f32 %v597, %v902
        %v931 = vmul.f32 %v599, %v904
        %v932 = vmul.f32 %v603, %v908
        %v933 = vmul.f32 %v605, %v910
        %v934 = vmul.f32 %v609, %v914
        %v935 = vmul.f32 %v611, %v916
        %v936 = vmul.f32 %v615, %v920
        %v937 = vmul.f32 %v617, %v922
        %v938 = vadd.f32 %v930, %v932
        %v939 = vadd.f32 %v938, %v934
        %v940 = vadd.f32 %v939, %v936
        %v941 = vrot.slane %v940, 4
        %v942 = vadd.f32 %v940, %v941
        %v943 = vrot.slane %v942, 2
        %v944 = vadd.f32 %v942, %v943
        %v945 = vrot.slane %v944, 1
        %v946 = vadd.f32 %v944, %v945
        %v947 = vadd.f32 %v931, %v933
        %v948 = vadd.f32 %v947, %v935
        %v949 = vadd.f32 %v948, %v937
        %v950 = vrot.slane %v949, 4
        %v951 = vadd.f32 %v949, %v950
        %v952 = vrot.slane %v951, 2
        %v953 = vadd.f32 %v951, %v952
        %v954 = vrot.slane %v953, 1
        %v955 = vadd.f32 %v953, %v954
        %v956 = vlog2.pop %v286
        %v957 = vmul.f32 %v956, 0.6931472
        %v958 = vsub.f32 %v957, 4.6051702
        %v959 = vmul.f32 %v958, 0.75
        %v960 = vmul.f32 %v959, 1.442695
        %v961 = vpow.pop %v960
        %v962 = vmin.f32 %v961, 1.0
        %v964 = vlaneseq
        %v965 = vshrl.u32 %v964, 7
        %v966 = vsub.s32 0, %v965
        %v967 = vrot.slane %v957, %v966
        %v968 = vlaneseq
        %v969 = vshrl.u32 %v968, 7
        %v970 = vsub.s32 1, %v969
        %v971 = vrot.slane %v957, %v970
        %v974 = vadd.f32 %v946, %v967
        %v975 = vadd.f32 %v955, %v971
        %v976 = vadd.f32 %v621, %v926
        %v977 = vadd.f32 %v623, %v928
        %v980 = vcombine.low %v974, %v975
        %v982 = vunpack.c.l.s4 1966171168
        %v983 = vunpack.c.0.s8 %v982
        %v984 = vlaneseq
        %v985 = vshrl.u32 %v984, 7
        %v986 = vsub.s32 %v983, %v985
        %v987 = vrot.slane %v980, %v986
        %v989 = vunpack.c.l.s4 1966171168
        %v990 = vunpack.c.0.s8 %v989
        %v991 = vlaneseq
        %v992 = vshrl.u32 %v991, 7
        %v993 = vsub.s32 %v990, %v992
        %v994 = vrot.slane %v987, %v993
        %v996 = vmul.f32 %v962, %v994
        %v997 = vmul.f32 %v996, %v994
        %v998 = vmul.f32 %v976, %v976
        %v999 = vmul.f32 %v977, %v977
        %v1001 = vlaneseq
        %v1002 = vshrl.u32 %v1001, 7
        %v1003 = vsub.s32 0, %v1002
        %v1004 = vrot.slane %v997, %v1003
        %v1005 = vlaneseq
        %v1006 = vshrl.u32 %v1005, 7
        %v1007 = vsub.s32 1, %v1006
        %v1008 = vrot.slane %v997, %v1007
        %v1012 = vlaneseq
        %v1013 = vshrl.u32 %v1012, 7
        %v1014 = vsub.s32 0, %v1013
        %v1015 = vrot.slane %v996, %v1014
        %v1016 = vlaneseq
        %v1017 = vshrl.u32 %v1016, 7
        %v1018 = vsub.s32 1, %v1017
        %v1019 = vrot.slane %v996, %v1018
        %v1023 = vlaneseq
        %v1024 = vshrl.u32 %v1023, 7
        %v1025 = vsub.s32 0, %v1024
        %v1026 = vrot.slane %v962, %v1025
        %v1027 = vlaneseq
        %v1028 = vshrl.u32 %v1027, 7
        %v1029 = vsub.s32 1, %v1028
        %v1030 = vrot.slane %v962, %v1029
        %v1035 = vrot.slane %v976, 5
        %v1036 = vrot.slane %v977, 5
        %v1041 = vrot.slane %v998, 4
        %v1042 = vrot.slane %v999, 4
        %vm1045 = vcmask 1040384
        %v1046 = vsel %vm1045, %v1004, %v1015
        %v1047 = vsel %vm1045, %v1008, %v1019
        %vm1048 = vcmask 1041408
        %v1049 = vsel %vm1048, %v1046, %v1026
        %v1050 = vsel %vm1048, %v1047, %v1030
        %vm1051 = vcmask 1042432
        %v1052 = vsel %vm1051, %v1049, %v1035
        %v1053 = vsel %vm1051, %v1050, %v1036
        %vm1054 = vcmask 1043456
        %v1055 = vsel %vm1054, %v1052, %v1041
        %v1056 = vsel %vm1054, %v1053, %v1042
        %vm1057 = vcmask 1044480
        %v1058 = vsel %vm1057, %v1055, 0.0
        %v1059 = vsel %vm1057, %v1056, 0.0
        %v1060 = vld [vmem:[#allocation2] sm:$0xff]
        %v1061 = vadd.f32 %v1058, %v1059
        %1062 = vadd.xlane.f32.xlu0 %v1061
        %v1063 = vpop.xlane.xlu0 %1062
        %v1064 = vadd.f32 %v1060, %v1063
        %vm1065 = vcmask 7168
        %1066 = vst.msk [vmem:[#allocation2] sm:$0xff] %vm1065, %v1064
        %p1067 = scmp.eq.s32.totalorder %s19, 1
        // Predicated region
        $region53: #{glove_loss_step.1} parent=39 // pred_check
          %p1068 = pneg %p1067
        $region54: #{glove_loss_step.1} parent=39 // pred_check_branch
          %1070 = sbr.rel (%p1068) target = $region56
        $region55: #{glove_loss_step.1} parent=39 // pred_region
          %v1071 = vld [vmem:[#allocation2] sm:$0xff]
          %v1072 = vmul.f32 %v1071, 512.0
          %v1073 = vmul.f32 %v1071, 2.0
          %v1075 = vrot.slane %v1071, 6
          %v1077 = vmul.f32 %v1073, %v1075
          %v1079 = vrot.slane %v1077, 3
          %v1081 = vadd.f32 %v1072, %v1079
          %v1082 = vmul.f32 %v1071, %v1075
          %v1084 = vrot.slane %v1082, 4
          %v1086 = vadd.f32 %v1081, %v1084
          %v1087 = vmul.f32 %v1086, 3.8146973e-06
          %vm1088 = vcmask 0
          %1089 = vst.msk [vmem:[#allocation8] sm:$0x1] %vm1088, %v1087
        $region56: #{glove_loss_step.1} parent=39 // pred_fallthru
          _
        // Predicated region
        $region57: #{glove_loss_step.1} parent=39 // pred_check
          %p1090 = pneg %p152
        $region58: #{glove_loss_step.1} parent=39 // pred_check_branch
          %1092 = sbr.rel (%p1090) target = $region60
        $region59: #{glove_loss_step.1} parent=39 // pred_region
          %s1094 = ssub.s32 16, 16
          %1095 = vsyncadd [#allocation5], %s1094
          %s1097 = sshll.u32 [#allocation8], 4
          %s1098 = int_to_ptr.vmem [resolvable:$true] %s1097
          %1100 = dma.vmem_to_hbm [thread:$0]  %s1098, 16, %s5, [#allocation5]
        $region60: #{glove_loss_step.1} parent=39 // pred_fallthru
          _
        // Predicated region
        $region61: #{glove_loss_step.1} parent=39 // pred_check
          %p1101 = pneg %p152
        $region62: #{glove_loss_step.1} parent=39 // pred_check_branch
          %1103 = sbr.rel (%p1101) target = $region64
        $region63: #{glove_loss_step.1} parent=39 // pred_region
          %1104 = dma.done [#allocation5], 16
        $region64: #{glove_loss_step.1} parent=39 // pred_fallthru
          _
      $region40: #{glove_loss_step.1} parent=5 // pred_fallthru
        _
      %p1105 = scmp.le.s32.totalorder 2, %s14
      // Predicated region
      $region65: #{glove_loss_step.1} parent=5 // pred_check
        %p1106 = pneg %p1105
      $region66: #{glove_loss_step.1} parent=5 // pred_check_branch
        %1108 = sbr.rel (%p1106) target = $region68
      $region67: #{glove_loss_step.1} parent=5 // pred_region
        %s1109 = ssub.s32 %s14, 2
      $region68: #{glove_loss_step.1} parent=5 // pred_fallthru
        _
    $region6: #{glove_loss_step.1} parent=1 // loop_footer
      %s18 = sadd.s32 1, %s14
    $region7: #{glove_loss_step.1} parent=1 // loop_footer_branch
      %13 = sbr.rel target = $region3
    $region8: #{glove_loss_step.1} parent=1 // loop_exit
      _
    %1110 = vsyncpa [#allocation4], 1
    %s1111 = scalar_lea.sflag [#allocation4], 1
    %1112 = vsyncpa %s1111, 1
    %1113 = vsyncpa [#allocation7], 1
    %1114 = vsyncpa [#allocation5], 1
    %s1115 = scalar_lea.sflag [#allocation5], 1
    %1116 = vsyncpa %s1115, 1

</llo_original>
